<compile_context>
chip_gen: v5e
topology: v5e:2x2
jax: 0.10.0
libtpu: 0.0.40
codegen_flags: <defaults>
</compile_context>

<pallas_src>
import jax
import jax.numpy as jnp
from jax.experimental import pallas as pl
from jax.experimental.pallas import tpu as pltpu


def _round_up(x, m):
    return ((x + m - 1) // m) * m


def actor_critic_kernel(obs_ref, w1_ref, b1_ref, w2_ref, b2_ref,
                        wh_ref, bh_ref, out_ref):
    # Shared MLP: Linear -> ReLU -> Linear -> ReLU.
    # bf16 operands on the MXU, f32 accumulation; biases/activation math in f32.
    h1 = jnp.dot(obs_ref[...], w1_ref[...], preferred_element_type=jnp.float32)
    h1 = jnp.maximum(h1 + b1_ref[...], 0.0).astype(w2_ref.dtype)
    h2 = jnp.dot(h1, w2_ref[...], preferred_element_type=jnp.float32)
    h2 = jnp.maximum(h2 + b2_ref[...], 0.0).astype(wh_ref.dtype)
    # Fused actor-mean + critic head: one small (hp x 8) matmul, one store of
    # an (tb, 8) tile (head padded only to 8 lanes -> ~16x less writeback than
    # padding to 128; the masked partial stores are second-order here).
    out_ref[...] = (
        jnp.dot(h2, wh_ref[...], preferred_element_type=jnp.float32) + bh_ref[...]
    )
    # Note: on a partial last batch tile, rows beyond B contain garbage that
    # flows through the MXU but is never written back -- benign.


def pack_params(params, weight_dtype=jnp.bfloat16):
    """One-time host-side packing:
       * zero-pad hidden dim to a multiple of 128,
       * fuse actor_mean + critic into one head padded to 8 output lanes,
       * cast weights to bf16 (biases stay f32 for exact bias/ReLU math).
    Zero padding is numerically exact (extra rows/cols contribute 0)."""
    w1, b1, w2, b2, wa, ba, wc, bc, log_std = params
    obs_dim, hidden = w1.shape
    action_dim = wa.shape[1]

    hp = _round_up(hidden, 128)            # padded hidden width
    head_pad = _round_up(action_dim + 1, 8)  # padded fused-head width (mean|value)

    w1p = jnp.zeros((obs_dim, hp), weight_dtype).at[:, :hidden].set(
        w1.astype(weight_dtype))
    b1p = jnp.zeros((1, hp), jnp.float32).at[:, :hidden].set(b1)
    w2p = jnp.zeros((hp, hp), weight_dtype).at[:hidden, :hidden].set(
        w2.astype(weight_dtype))
    b2p = jnp.zeros((1, hp), jnp.float32).at[:, :hidden].set(b2)
    whp = (jnp.zeros((hp, head_pad), weight_dtype)
           .at[:hidden, :action_dim].set(wa.astype(weight_dtype))
           .at[:hidden, action_dim].set(wc[:, 0].astype(weight_dtype)))
    bhp = (jnp.zeros((1, head_pad), jnp.float32)
           .at[:, :action_dim].set(ba)
           .at[:, action_dim].set(bc[0]))

    return {"w1": w1p, "b1": b1p, "w2": w2p, "b2": b2p, "wh": whp, "bh": bhp,
            "log_std": log_std, "action_dim": action_dim}


def actor_critic_forward(obs, packed, *, batch_block=4096):
    """Fused ActorCritic forward. Returns (action_mean, action_std, value)."""
    B, obs_dim = obs.shape
    w1, b1 = packed["w1"], packed["b1"]
    w2, b2 = packed["w2"], packed["b2"]
    wh, bh = packed["wh"], packed["bh"]
    action_dim = packed["action_dim"]
    hp = w2.shape[0]
    head_pad = wh.shape[1]
    weight_dtype = w1.dtype

    # Batch tile selection:
    #   * big default tile (4096) amortizes the ~0.35 us/grid-step overhead;
    #   * keep >=2 grid tiles when B allows so v7x's two TensorCores both get
    #     work via the "parallel" axis (no-op on single-TC v5e/v6e);
    #   * 8-row (sublane) alignment whenever the batch is actually tiled;
    #     partial last tile is handled by Pallas (OOB rows never written).
    tb = min(batch_block, B)
    if B > 16:
        tb = min(tb, (B + 1) // 2)
    if tb != B:
        tb = max(8, (tb // 8) * 8)
    grid = (pl.cdiv(B, tb),)

    # Stream obs in bf16 (halves DMA bytes); accumulation in the kernel is f32.
    obs_c = obs.astype(weight_dtype)

    # Weights/biases: constant block index -> VMEM resident, single DMA.
    const = lambda shape: pl.BlockSpec(shape, lambda i: (0, 0))

    weight_bytes = sum(int(x.size) * x.dtype.itemsize
                       for x in (w1, b1, w2, b2, wh, bh))
    cost = pl.CostEstimate(
        flops=int(2 * B * (obs_dim * hp + hp * hp + hp * head_pad)),
        transcendentals=0,
        bytes_accessed=int(B * (obs_dim * obs_c.dtype.itemsize + head_pad * 4)
                           + weight_bytes),
    )

    heads = pl.pallas_call(
        actor_critic_kernel,
        out_shape=jax.ShapeDtypeStruct((B, head_pad), jnp.float32),
        grid=grid,
        in_specs=[
            pl.BlockSpec((tb, obs_dim), lambda i: (i, 0)),
            const(w1.shape), const(b1.shape),
            const(w2.shape), const(b2.shape),
            const(wh.shape), const(bh.shape),
        ],
        out_specs=pl.BlockSpec((tb, head_pad), lambda i: (i, 0)),
        compiler_params=pltpu.CompilerParams(
            dimension_semantics=("parallel",)),
        cost_estimate=cost,
    )(obs_c, w1, b1, w2, b2, wh, bh)

    # Slices of the small (B, 8) head buffer fuse into downstream consumers.
    action_mean = heads[:, :action_dim]
    value = heads[:, action_dim:action_dim + 1]
    # Batch-independent parameter transform -> computed outside the kernel.
    action_std = jnp.exp(packed["log_std"])
    return action_mean, action_std, value


def init_params(key, obs_dim, action_dim, hidden_dim):
    """Deterministic PyTorch-style (uniform +-1/sqrt(fan_in)) init.
    Weights stored as [in, out] (already transposed for x @ W)."""
    ks = jax.random.split(key, 8)

    def lin(kw, kb, fan_in, fan_out):
        bound = 1.0 / jnp.sqrt(jnp.float32(fan_in))
        w = jax.random.uniform(kw, (fan_in, fan_out), jnp.float32, -bound, bound)
        b = jax.random.uniform(kb, (fan_out,), jnp.float32, -bound, bound)
        return w, b

    w1, b1 = lin(ks[0], ks[1], obs_dim, hidden_dim)
    w2, b2 = lin(ks[2], ks[3], hidden_dim, hidden_dim)
    wa, ba = lin(ks[4], ks[5], hidden_dim, action_dim)
    wc, bc = lin(ks[6], ks[7], hidden_dim, 1)
    log_std = jnp.zeros((action_dim,), jnp.float32)  # nn.Parameter(torch.zeros(A))
    return (w1, b1, w2, b2, wa, ba, wc, bc, log_std)


def reference_forward(obs, params):
    """Pure-JAX reference (mirrors the PyTorch forward, unpadded f32 params)."""
    w1, b1, w2, b2, wa, ba, wc, bc, log_std = params
    h = jnp.maximum(obs @ w1 + b1, 0.0)
    h = jnp.maximum(h @ w2 + b2, 0.0)
    return h @ wa + ba, jnp.exp(log_std), h @ wc + bc


if __name__ == "__main__":
    B, OBS_DIM, ACTION_DIM, HIDDEN_DIM = 8, 16, 4, 32

    key = jax.random.PRNGKey(0)
    k_obs, k_params = jax.random.split(key)

    obs = jax.random.normal(k_obs, (B, OBS_DIM), jnp.float32)
    params = init_params(k_params, OBS_DIM, ACTION_DIM, HIDDEN_DIM)
    packed = pack_params(params)  # one-time pad/fuse/bf16-cast, outside the kernel

    mean, std, value = actor_critic_forward(obs, packed)
    jax.block_until_ready((mean, std, value))

    # Sanity check against pure-JAX f32 reference.  bf16 operands with f32
    # accumulation -> relaxed tolerances on mean/value.
    mean_r, std_r, value_r = reference_forward(obs, params)
    assert mean.shape == (B, ACTION_DIM)
    assert std.shape == (ACTION_DIM,)
    assert value.shape == (B, 1)
    assert jnp.allclose(mean, mean_r, atol=5e-2, rtol=5e-2)
    assert jnp.allclose(std, std_r, atol=1e-6, rtol=1e-6)
    assert jnp.allclose(value, value_r, atol=5e-2, rtol=5e-2)

    # TODO(synk): get_action's Normal sampling / log_prob is stochastic
    # host-side glue in the original module and is not part of the forward kernel.
    print("KERNEL_OK")
</pallas_src>

<mosaic_0001>
module attributes {stable_mosaic.version = 11 : i64} {
  func.func @actor_critic_kernel(%arg0: i32, %arg1: memref<8x16xbf16, #tpu.memory_space<vmem>>, %arg2: memref<16x128xbf16, #tpu.memory_space<vmem>>, %arg3: memref<1x128xf32, #tpu.memory_space<vmem>>, %arg4: memref<128x128xbf16, #tpu.memory_space<vmem>>, %arg5: memref<1x128xf32, #tpu.memory_space<vmem>>, %arg6: memref<128x8xbf16, #tpu.memory_space<vmem>>, %arg7: memref<1x8xf32, #tpu.memory_space<vmem>>, %arg8: memref<8x8xf32, #tpu.memory_space<vmem>>) attributes {dimension_semantics = [#tpu.dimension_semantics<parallel>], iteration_bounds = array<i64: 1>, scalar_prefetch = 0 : i64, scratch_operands = 0 : i64, tpu.core_type = #tpu.core_type<tc>, window_params = [{transform_indices = @transform_0, window_bounds = array<i64: 8, 16>}, {pipeline_mode = #tpu.pipeline_mode<synchronous>, transform_indices = @transform_1, window_bounds = array<i64: 16, 128>}, {pipeline_mode = #tpu.pipeline_mode<synchronous>, transform_indices = @transform_2, window_bounds = array<i64: 1, 128>}, {pipeline_mode = #tpu.pipeline_mode<synchronous>, transform_indices = @transform_3, window_bounds = array<i64: 128, 128>}, {pipeline_mode = #tpu.pipeline_mode<synchronous>, transform_indices = @transform_4, window_bounds = array<i64: 1, 128>}, {pipeline_mode = #tpu.pipeline_mode<synchronous>, transform_indices = @transform_5, window_bounds = array<i64: 128, 8>}, {pipeline_mode = #tpu.pipeline_mode<synchronous>, transform_indices = @transform_6, window_bounds = array<i64: 1, 8>}, {transform_indices = @transform_7, window_bounds = array<i64: 8, 8>}]} {
    %c0 = arith.constant 0 : index
    %c0_0 = arith.constant 0 : index
    %0 = vector.load %arg1[%c0, %c0_0] : memref<8x16xbf16, #tpu.memory_space<vmem>>, vector<8x16xbf16>
    %c0_1 = arith.constant 0 : index
    %c0_2 = arith.constant 0 : index
    %1 = vector.load %arg2[%c0_1, %c0_2] : memref<16x128xbf16, #tpu.memory_space<vmem>>, vector<16x128xbf16>
    %cst = arith.constant dense<0.000000e+00> : vector<8x128xf32>
    %2 = tpu.matmul %0, %1, %cst {dimension_numbers = #tpu.dot_dimension_numbers<[1], [0], [0], [1], [0, 0, 1, 1], [], []>} : vector<8x16xbf16>, vector<16x128xbf16>, vector<8x128xf32> -> vector<8x128xf32>
    %c0_3 = arith.constant 0 : index
    %c0_4 = arith.constant 0 : index
    %3 = vector.load %arg3[%c0_3, %c0_4] : memref<1x128xf32, #tpu.memory_space<vmem>>, vector<1x128xf32>
    %4 = vector.broadcast %3 : vector<1x128xf32> to vector<8x128xf32>
    %5 = arith.addf %2, %4 : vector<8x128xf32>
    %cst_5 = arith.constant 0.000000e+00 : f32
    %6 = vector.broadcast %cst_5 : f32 to vector<8x128xf32>
    %7 = arith.maximumf %5, %6 : vector<8x128xf32>
    %8 = arith.truncf %7 : vector<8x128xf32> to vector<8x128xbf16>
    %c0_6 = arith.constant 0 : index
    %c0_7 = arith.constant 0 : index
    %9 = vector.load %arg4[%c0_6, %c0_7] : memref<128x128xbf16, #tpu.memory_space<vmem>>, vector<128x128xbf16>
    %cst_8 = arith.constant dense<0.000000e+00> : vector<8x128xf32>
    %10 = tpu.matmul %8, %9, %cst_8 {dimension_numbers = #tpu.dot_dimension_numbers<[1], [0], [0], [1], [0, 0, 1, 1], [], []>} : vector<8x128xbf16>, vector<128x128xbf16>, vector<8x128xf32> -> vector<8x128xf32>
    %c0_9 = arith.constant 0 : index
    %c0_10 = arith.constant 0 : index
    %11 = vector.load %arg5[%c0_9, %c0_10] : memref<1x128xf32, #tpu.memory_space<vmem>>, vector<1x128xf32>
    %12 = vector.broadcast %11 : vector<1x128xf32> to vector<8x128xf32>
    %13 = arith.addf %10, %12 : vector<8x128xf32>
    %cst_11 = arith.constant 0.000000e+00 : f32
    %14 = vector.broadcast %cst_11 : f32 to vector<8x128xf32>
    %15 = arith.maximumf %13, %14 : vector<8x128xf32>
    %16 = arith.truncf %15 : vector<8x128xf32> to vector<8x128xbf16>
    %c0_12 = arith.constant 0 : index
    %c0_13 = arith.constant 0 : index
    %17 = vector.load %arg6[%c0_12, %c0_13] : memref<128x8xbf16, #tpu.memory_space<vmem>>, vector<128x8xbf16>
    %cst_14 = arith.constant dense<0.000000e+00> : vector<8x8xf32>
    %18 = tpu.matmul %16, %17, %cst_14 {dimension_numbers = #tpu.dot_dimension_numbers<[1], [0], [0], [1], [0, 0, 1, 1], [], []>} : vector<8x128xbf16>, vector<128x8xbf16>, vector<8x8xf32> -> vector<8x8xf32>
    %c0_15 = arith.constant 0 : index
    %c0_16 = arith.constant 0 : index
    %19 = vector.load %arg7[%c0_15, %c0_16] : memref<1x8xf32, #tpu.memory_space<vmem>>, vector<1x8xf32>
    %20 = vector.broadcast %19 : vector<1x8xf32> to vector<8x8xf32>
    %21 = arith.addf %18, %20 : vector<8x8xf32>
    %c0_17 = arith.constant 0 : index
    %c0_18 = arith.constant 0 : index
    %22 = vector.load %arg8[%c0_17, %c0_18] : memref<8x8xf32, #tpu.memory_space<vmem>>, vector<8x8xf32>
    tpu.vector_store %arg8[%c0_17, %c0_18], %21 {strides = array<i32>} : memref<8x8xf32, #tpu.memory_space<vmem>>, vector<8x8xf32>,
    return
  }
  func.func @transform_0(%arg0: i32) -> (i32, i32) {
    %c0_i32 = arith.constant 0 : i32
    %c0_i32_0 = arith.constant 0 : i32
    return %arg0, %c0_i32 : i32, i32
  }
  func.func @transform_1(%arg0: i32) -> (i32, i32) {
    %c0_i32 = arith.constant 0 : i32
    %c0_i32_0 = arith.constant 0 : i32
    %c0_i32_1 = arith.constant 0 : i32
    return %c0_i32, %c0_i32_0 : i32, i32
  }
  func.func @transform_2(%arg0: i32) -> (i32, i32) {
    %c0_i32 = arith.constant 0 : i32
    %c0_i32_0 = arith.constant 0 : i32
    %c0_i32_1 = arith.constant 0 : i32
    return %c0_i32, %c0_i32_0 : i32, i32
  }
  func.func @transform_3(%arg0: i32) -> (i32, i32) {
    %c0_i32 = arith.constant 0 : i32
    %c0_i32_0 = arith.constant 0 : i32
    %c0_i32_1 = arith.constant 0 : i32
    return %c0_i32, %c0_i32_0 : i32, i32
  }
  func.func @transform_4(%arg0: i32) -> (i32, i32) {
    %c0_i32 = arith.constant 0 : i32
    %c0_i32_0 = arith.constant 0 : i32
    %c0_i32_1 = arith.constant 0 : i32
    return %c0_i32, %c0_i32_0 : i32, i32
  }
  func.func @transform_5(%arg0: i32) -> (i32, i32) {
    %c0_i32 = arith.constant 0 : i32
    %c0_i32_0 = arith.constant 0 : i32
    %c0_i32_1 = arith.constant 0 : i32
    return %c0_i32, %c0_i32_0 : i32, i32
  }
  func.func @transform_6(%arg0: i32) -> (i32, i32) {
    %c0_i32 = arith.constant 0 : i32
    %c0_i32_0 = arith.constant 0 : i32
    %c0_i32_1 = arith.constant 0 : i32
    return %c0_i32, %c0_i32_0 : i32, i32
  }
  func.func @transform_7(%arg0: i32) -> (i32, i32) {
    %c0_i32 = arith.constant 0 : i32
    %c0_i32_0 = arith.constant 0 : i32
    return %arg0, %c0_i32 : i32, i32
  }
}

</mosaic_0001>

<llo_original>
// kernel: tpu_custom_call.1
$region0: #{tpu_custom_call.1}
  #allocation0 [shape = 'u32[]', space=smem, size = 0x4, offset = 0x4, fixed_abs, tag = 'smem constant byte address 0x4 - core index']
  #allocation1 [shape = 'u32[72,128]{1,0:T(1,128)}', space=vmem, size = 0x9000, scoped, tag = 'internal scratch']
  %s0 = inlined_call_operand.vmem [shape: bf16[8,16], index: 0, kind: input, shape index: {}]
  %s1 = inlined_call_operand.hbm [shape: bf16[16,128], index: 1, kind: input, shape index: {}]
  %s2 = inlined_call_operand.hbm [shape: f32[1,128], index: 2, kind: input, shape index: {}]
  %s3 = inlined_call_operand.vmem [shape: bf16[128,128], index: 3, kind: input, shape index: {}]
  %s4 = inlined_call_operand.hbm [shape: f32[1,128], index: 4, kind: input, shape index: {}]
  %s5 = inlined_call_operand.vmem [shape: bf16[128,8], index: 5, kind: input, shape index: {}]
  %s6 = inlined_call_operand.vmem [shape: f32[1,8], index: 6, kind: input, shape index: {}]
  %s7 = inlined_call_operand.hbm [shape: f32[8,8], index: 7, kind: output, shape index: {}]
  %s8 = sld [smem:[#allocation0]]
  $region50: #{tpu_custom_call.1} parent=0
    _
  %s10 = ssub.s32 1, %s8
  %s11 = scalar_select 0, %s10, %s8
  $region1: #{tpu_custom_call.1} parent=0
    #allocation2 [shape = 'u8[4096]{0}', space=vmem, size = 0x1000, scoped, tag = 'input window, operand 1, single buffered']
    #allocation3 [shape = 's32[1]{0}', space=sflag, size = 0x4, scoped, tag = 'scoped memory for tpu_custom_call.1']
    #allocation4 [shape = 's32[1]{0}', space=sflag, size = 0x4, scoped, tag = 'scoped memory for tpu_custom_call.1']
    #allocation5 [shape = 'u8[512]{0}', space=vmem, size = 0x400, scoped, tag = 'input window, operand 2, single buffered']
    #allocation6 [shape = 's32[1]{0}', space=sflag, size = 0x4, scoped, tag = 'scoped memory for tpu_custom_call.1']
    #allocation7 [shape = 'u8[512]{0}', space=vmem, size = 0x400, scoped, tag = 'input window, operand 4, single buffered']
    #allocation8 [shape = 'u8[4096]{0}', space=vmem, size = 0x1000, scoped, tag = 'output window, operand 0, single buffered']
    %12 = vsyncpa [#allocation3], 0
    %13 = vsyncpa [#allocation6], 0
    %14 = vsyncpa [#allocation4], 0
    // Predicated region
    $region2: #{tpu_custom_call.1} parent=1 // pred_check
      _
    $region3: #{tpu_custom_call.1} parent=1 // pred_check_branch
      %16 = sbr.rel (0) target = $region5
    $region4: #{tpu_custom_call.1} parent=1 // pred_region
      _
    $region5: #{tpu_custom_call.1} parent=1 // pred_fallthru
      _
    // Predicated region
    $region6: #{tpu_custom_call.1} parent=1 // pred_check
      _
    $region7: #{tpu_custom_call.1} parent=1 // pred_check_branch
      %18 = sbr.rel (0) target = $region9
    $region8: #{tpu_custom_call.1} parent=1 // pred_region
      %20 = vsyncadd [#allocation3], 0
      %s21 = sshll.u32 %s1, 4
      %s22 = int_to_ptr.hbm [resolvable:$true] %s21
      %s23 = sshll.u32 [#allocation2], 4
      %s24 = int_to_ptr.vmem [resolvable:$true] %s23
      %29 = dma.hbm_to_vmem [thread:$0]  %s22, 128, %s24, [#allocation3], 64, 64, 4
    $region9: #{tpu_custom_call.1} parent=1 // pred_fallthru
      _
    // Predicated region
    $region10: #{tpu_custom_call.1} parent=1 // pred_check
      _
    $region11: #{tpu_custom_call.1} parent=1 // pred_check_branch
      %31 = sbr.rel (0) target = $region13
    $region12: #{tpu_custom_call.1} parent=1 // pred_region
      %33 = vsyncadd [#allocation6], 0
      %s35 = sshll.u32 %s2, 4
      %s36 = int_to_ptr.hbm [resolvable:$true] %s35
      %s37 = sshll.u32 [#allocation5], 4
      %s38 = int_to_ptr.vmem [resolvable:$true] %s37
      %40 = dma.hbm_to_vmem [thread:$0]  %s36, 16, %s38, [#allocation6]
    $region13: #{tpu_custom_call.1} parent=1 // pred_fallthru
      _
    // Predicated region
    $region14: #{tpu_custom_call.1} parent=1 // pred_check
      _
    $region15: #{tpu_custom_call.1} parent=1 // pred_check_branch
      %42 = sbr.rel (0) target = $region17
    $region16: #{tpu_custom_call.1} parent=1 // pred_region
      _
    $region17: #{tpu_custom_call.1} parent=1 // pred_fallthru
      _
    // Predicated region
    $region18: #{tpu_custom_call.1} parent=1 // pred_check
      _
    $region19: #{tpu_custom_call.1} parent=1 // pred_check_branch
      %44 = sbr.rel (0) target = $region21
    $region20: #{tpu_custom_call.1} parent=1 // pred_region
      %46 = vsyncadd [#allocation6], 0
      %s48 = sshll.u32 %s4, 4
      %s49 = int_to_ptr.hbm [resolvable:$true] %s48
      %s50 = sshll.u32 [#allocation7], 4
      %s51 = int_to_ptr.vmem [resolvable:$true] %s50
      %53 = dma.hbm_to_vmem [thread:$0]  %s49, 16, %s51, [#allocation6]
    $region21: #{tpu_custom_call.1} parent=1 // pred_fallthru
      _
    // Predicated region
    $region22: #{tpu_custom_call.1} parent=1 // pred_check
      _
    $region23: #{tpu_custom_call.1} parent=1 // pred_check_branch
      %55 = sbr.rel (0) target = $region25
    $region24: #{tpu_custom_call.1} parent=1 // pred_region
      _
    $region25: #{tpu_custom_call.1} parent=1 // pred_fallthru
      _
    // Predicated region
    $region26: #{tpu_custom_call.1} parent=1 // pred_check
      _
    $region27: #{tpu_custom_call.1} parent=1 // pred_check_branch
      %57 = sbr.rel (0) target = $region29
    $region28: #{tpu_custom_call.1} parent=1 // pred_region
      _
    $region29: #{tpu_custom_call.1} parent=1 // pred_fallthru
      _
    // Predicated region
    $region30: #{tpu_custom_call.1} parent=1 // pred_check
      _
    $region31: #{tpu_custom_call.1} parent=1 // pred_check_branch
      %59 = sbr.rel (0) target = $region33
    $region32: #{tpu_custom_call.1} parent=1 // pred_region
      %61 = dma.done [#allocation3], 128
    $region33: #{tpu_custom_call.1} parent=1 // pred_fallthru
      _
    // Predicated region
    $region34: #{tpu_custom_call.1} parent=1 // pred_check
      _
    $region35: #{tpu_custom_call.1} parent=1 // pred_check_branch
      %63 = sbr.rel (0) target = $region37
    $region36: #{tpu_custom_call.1} parent=1 // pred_region
      %65 = dma.done [#allocation6], 16
    $region37: #{tpu_custom_call.1} parent=1 // pred_fallthru
      _
    // Predicated region
    $region38: #{tpu_custom_call.1} parent=1 // pred_check
      _
    $region39: #{tpu_custom_call.1} parent=1 // pred_check_branch
      %67 = sbr.rel (0) target = $region41
    $region40: #{tpu_custom_call.1} parent=1 // pred_region
      %69 = dma.done [#allocation6], 16
    $region41: #{tpu_custom_call.1} parent=1 // pred_fallthru
      _
    %v71 = vld [vmem:[%s0] sm:$0xf]
    %v72 = vld [vmem:[#allocation2] sm:$0xf]
    %v73 = vld [vmem:[#allocation2 + $0x4] sm:$0xf]
    %v74 = vld [vmem:[#allocation5] sm:$0x1]
    %v76 = vperm.slane %v74, 0
    %v80 = vunpack.c.l.b16 %v72
    %v81 = vunpack.c.l.b16 %v73
    %v82 = vpack.c.b16 %v81, %v80
    %vm84 = vcmask 130048
    %v86 = vsel %vm84, %v71, 0
    %88 = vmatpush.bf16.msra.mxu0 0
    %89 = vmatpush.bf16.msra.mxu0 0
    %90 = vmatpush.bf16.msra.mxu0 0
    %91 = vmatpush.bf16.msra.mxu0 0
    %92 = vmatpush.bf16.msra.mxu0 0
    %93 = vmatpush.bf16.msra.mxu0 0
    %94 = vmatpush.bf16.msra.mxu0 0
    %95 = vmatpush.bf16.msra.mxu0 %v82
    %96 = vmatmul.bf16.gmra.mxu0 %v86
    %v97 = vpop.f32.mrf.mxu0
    %v98 = vadd.f32 %v76, %v97
    %v99 = vpop.f32.mrf.mxu0
    %100 = vdwg.mxu0
    %v101 = vmax.f32 %v98, 0.0
    %v102 = vpack.c.bf16 %v101, %v101
    %v103 = vld [vmem:[%s3] sm:$0xf]
    %v104 = vld [vmem:[%s3 + $0x4] sm:$0xf]
    %v105 = vld [vmem:[%s3 + $0x8] sm:$0xf]
    %v106 = vld [vmem:[%s3 + $0xc] sm:$0xf]
    %v107 = vld [vmem:[%s3 + $0x10] sm:$0xf]
    %v108 = vld [vmem:[%s3 + $0x14] sm:$0xf]
    %v109 = vld [vmem:[%s3 + $0x18] sm:$0xf]
    %v110 = vld [vmem:[%s3 + $0x1c] sm:$0xf]
    %v111 = vld [vmem:[%s3 + $0x20] sm:$0xf]
    %v112 = vld [vmem:[%s3 + $0x24] sm:$0xf]
    %v113 = vld [vmem:[%s3 + $0x28] sm:$0xf]
    %v114 = vld [vmem:[%s3 + $0x2c] sm:$0xf]
    %v115 = vld [vmem:[%s3 + $0x30] sm:$0xf]
    %v116 = vld [vmem:[%s3 + $0x34] sm:$0xf]
    %v117 = vld [vmem:[%s3 + $0x38] sm:$0xf]
    %v118 = vld [vmem:[%s3 + $0x3c] sm:$0xf]
    %v119 = vld [vmem:[#allocation7] sm:$0x1]
    %v121 = vperm.slane %v119, 0
    %v139 = vunpack.c.l.b16 %v103
    %v140 = vunpack.c.l.b16 %v104
    %v141 = vunpack.c.l.b16 %v105
    %v142 = vunpack.c.l.b16 %v106
    %v143 = vunpack.c.l.b16 %v107
    %v144 = vunpack.c.l.b16 %v108
    %v145 = vunpack.c.l.b16 %v109
    %v146 = vunpack.c.l.b16 %v110
    %v147 = vunpack.c.l.b16 %v111
    %v148 = vunpack.c.l.b16 %v112
    %v149 = vunpack.c.l.b16 %v113
    %v150 = vunpack.c.l.b16 %v114
    %v151 = vunpack.c.l.b16 %v115
    %v152 = vunpack.c.l.b16 %v116
    %v153 = vunpack.c.l.b16 %v117
    %v154 = vunpack.c.l.b16 %v118
    %v155 = vpack.c.b16 %v140, %v139
    %v156 = vpack.c.b16 %v142, %v141
    %v157 = vpack.c.b16 %v144, %v143
    %v158 = vpack.c.b16 %v146, %v145
    %v159 = vpack.c.b16 %v148, %v147
    %v160 = vpack.c.b16 %v150, %v149
    %v161 = vpack.c.b16 %v152, %v151
    %v162 = vpack.c.b16 %v154, %v153
    %171 = vmatpush.bf16.msra.mxu0 %v162
    %172 = vmatpush.bf16.msra.mxu0 %v161
    %173 = vmatpush.bf16.msra.mxu0 %v160
    %174 = vmatpush.bf16.msra.mxu0 %v159
    %175 = vmatpush.bf16.msra.mxu0 %v158
    %176 = vmatpush.bf16.msra.mxu0 %v157
    %177 = vmatpush.bf16.msra.mxu0 %v156
    %178 = vmatpush.bf16.msra.mxu0 %v155
    %179 = vmatmul.bf16.gmra.mxu0 %v102
    %v180 = vpop.f32.mrf.mxu0
    %v181 = vadd.f32 %v121, %v180
    %v182 = vpop.f32.mrf.mxu0
    %183 = vdwg.mxu0
    %v184 = vmax.f32 %v181, 0.0
    %v185 = vpack.c.bf16 %v184, %v184
    %v186 = vld [vmem:[%s5] sm:$0xf]
    %v187 = vld [vmem:[%s5 + $0x4] sm:$0xf]
    %v188 = vld [vmem:[%s5 + $0x8] sm:$0xf]
    %v189 = vld [vmem:[%s5 + $0xc] sm:$0xf]
    %v190 = vld [vmem:[%s5 + $0x10] sm:$0xf]
    %v191 = vld [vmem:[%s5 + $0x14] sm:$0xf]
    %v192 = vld [vmem:[%s5 + $0x18] sm:$0xf]
    %v193 = vld [vmem:[%s5 + $0x1c] sm:$0xf]
    %v194 = vld [vmem:[%s5 + $0x20] sm:$0xf]
    %v195 = vld [vmem:[%s5 + $0x24] sm:$0xf]
    %v196 = vld [vmem:[%s5 + $0x28] sm:$0xf]
    %v197 = vld [vmem:[%s5 + $0x2c] sm:$0xf]
    %v198 = vld [vmem:[%s5 + $0x30] sm:$0xf]
    %v199 = vld [vmem:[%s5 + $0x34] sm:$0xf]
    %v200 = vld [vmem:[%s5 + $0x38] sm:$0xf]
    %v201 = vld [vmem:[%s5 + $0x3c] sm:$0xf]
    %v202 = vld [vmem:[%s6] sm:$0x1]
    %v204 = vperm.slane %v202, 0
    %v222 = vunpack.c.l.b16 %v186
    %v223 = vunpack.c.l.b16 %v187
    %v224 = vunpack.c.l.b16 %v188
    %v225 = vunpack.c.l.b16 %v189
    %v226 = vunpack.c.l.b16 %v190
    %v227 = vunpack.c.l.b16 %v191
    %v228 = vunpack.c.l.b16 %v192
    %v229 = vunpack.c.l.b16 %v193
    %v230 = vunpack.c.l.b16 %v194
    %v231 = vunpack.c.l.b16 %v195
    %v232 = vunpack.c.l.b16 %v196
    %v233 = vunpack.c.l.b16 %v197
    %v234 = vunpack.c.l.b16 %v198
    %v235 = vunpack.c.l.b16 %v199
    %v236 = vunpack.c.l.b16 %v200
    %v237 = vunpack.c.l.b16 %v201
    %v238 = vpack.c.b16 %v223, %v222
    %v239 = vpack.c.b16 %v225, %v224
    %v240 = vpack.c.b16 %v227, %v226
    %v241 = vpack.c.b16 %v229, %v228
    %v242 = vpack.c.b16 %v231, %v230
    %v243 = vpack.c.b16 %v233, %v232
    %v244 = vpack.c.b16 %v235, %v234
    %v245 = vpack.c.b16 %v237, %v236
    %254 = vmatpush.bf16.msra.mxu0 %v245
    %255 = vmatpush.bf16.msra.mxu0 %v244
    %256 = vmatpush.bf16.msra.mxu0 %v243
    %257 = vmatpush.bf16.msra.mxu0 %v242
    %258 = vmatpush.bf16.msra.mxu0 %v241
    %259 = vmatpush.bf16.msra.mxu0 %v240
    %260 = vmatpush.bf16.msra.mxu0 %v239
    %261 = vmatpush.bf16.msra.mxu0 %v238
    %262 = vmatmul.bf16.gmra.mxu0 %v185
    %v263 = vpop.f32.mrf.mxu0
    %v264 = vadd.f32 %v204, %v263
    %v265 = vpop.f32.mrf.mxu0
    %266 = vdwg.mxu0
    %vm267 = vcmask 64512
    %268 = vst.msk [vmem:[#allocation8] sm:$0xff] %vm267, %v264
    // Predicated region
    $region42: #{tpu_custom_call.1} parent=1 // pred_check
      _
    $region43: #{tpu_custom_call.1} parent=1 // pred_check_branch
      %270 = sbr.rel (0) target = $region45
    $region44: #{tpu_custom_call.1} parent=1 // pred_region
      %272 = vsyncadd [#allocation4], 0
      %s274 = sshll.u32 [#allocation8], 4
      %s275 = int_to_ptr.vmem [resolvable:$true] %s274
      %s276 = sshll.u32 %s7, 4
      %s277 = int_to_ptr.hbm [resolvable:$true] %s276
      %279 = dma.vmem_to_hbm [thread:$0]  %s275, 128, %s277, [#allocation4]
    $region45: #{tpu_custom_call.1} parent=1 // pred_fallthru
      _
    // Predicated region
    $region46: #{tpu_custom_call.1} parent=1 // pred_check
      _
    $region47: #{tpu_custom_call.1} parent=1 // pred_check_branch
      %281 = sbr.rel (0) target = $region49
    $region48: #{tpu_custom_call.1} parent=1 // pred_region
      %283 = dma.done [#allocation4], 128
    $region49: #{tpu_custom_call.1} parent=1 // pred_fallthru
      _
    %284 = vsyncpa [#allocation3], 1
    %285 = vsyncpa [#allocation6], 1
    %286 = vsyncpa [#allocation4], 1

</llo_original>
